<compile_context>
chip_gen: v5e
topology: v5e:2x2
jax: 0.10.0
libtpu: 0.0.40
codegen_flags: <defaults>
</compile_context>

<pallas_src>
import jax
import jax.numpy as jnp
from jax.experimental import pallas as pl
from jax.experimental.pallas import tpu as pltpu


def _head_kernel(x_ref, w1_ref, b1_ref, w2_ref, b2_ref, w3_ref, b3_ref,
                 o_ref, acc_ref):
    """One K-slab of simpleVQAHead with the temporal mean pre-folded.

    x_ref  : (b, t, tk)  K-slab of the concatenated features
    w1_ref : (tk, C4)    matching row-slab of W1
    b1_ref : (1, C4)     w2_ref : (C4, C32)    b2_ref : (1, C32)
    w3_ref : (1, C32)    final-layer weight as a row (nn.Linear native layout)
    b3_ref : (1, 1)
    o_ref  : (b, 1)      acc_ref: (b, C4) f32 scratch, accumulates over K
    """
    k = pl.program_id(0)

    @pl.when(k == 0)
    def _init():
        acc_ref[...] = jnp.zeros_like(acc_ref)

    # Temporal mean BEFORE the matmuls: the head is purely affine, so this is
    # mathematically identical to mean-after-head and cuts matmul work by T.
    x_mean = jnp.mean(x_ref[...], axis=1)                       # (b, tk)
    acc_ref[...] += jnp.dot(x_mean, w1_ref[...],
                            preferred_element_type=jnp.float32)  # (b, C4)

    @pl.when(k == pl.num_programs(0) - 1)
    def _finalize():
        h1 = acc_ref[...] + b1_ref[...]                          # (b, C4)
        h2 = jnp.dot(h1, w2_ref[...],
                     preferred_element_type=jnp.float32) + b2_ref[...]  # (b, C32)
        # Final Linear(C32, 1): N=1, keep it off the MXU (VPU mul + lane sum).
        h3 = jnp.sum(h2 * w3_ref[...], axis=-1, keepdims=True) + b3_ref[...]
        o_ref[...] = h3.astype(o_ref.dtype)                      # (b, 1)


def _pick_block_k(c):
    """Largest MXU/lane-friendly K tile that divides C."""
    for tk in (512, 256, 128):
        if c % tk == 0:
            return tk
    return c


def vqa_head_pallas(x, w1, b1, w2, b2, w3_row, b3, *, block_k=None):
    """simpleVQAHead.forward: x (b, t, C) -> scores (b, 1).

    Weight layout: w1 (C, C4) and w2 (C4, C32) are stored (in, out) -- i.e.
    transposed nn.Linear weights -- so the kernel computes x @ W + b; w3_row is
    the last layer's weight in nn.Linear's native (out=1, in=C32) layout, used
    as a broadcast row on the VPU; biases are (1, out).
    """
    b, t, c = x.shape
    c4 = w1.shape[1]
    c32 = w2.shape[1]
    tk = block_k if block_k is not None else _pick_block_k(c)
    assert c % tk == 0, (c, tk)
    nk = c // tk

    return pl.pallas_call(
        _head_kernel,
        out_shape=jax.ShapeDtypeStruct((b, 1), jnp.float32),
        grid_spec=pltpu.PrefetchScalarGridSpec(
            num_scalar_prefetch=0,
            grid=(nk,),                                           # stream W1 over K
            in_specs=[
                pl.BlockSpec((b, t, tk), lambda k: (0, 0, k)),    # x  K-slab
                pl.BlockSpec((tk, c4), lambda k: (k, 0)),         # W1 K-slab
                pl.BlockSpec((1, c4), lambda k: (0, 0)),          # b1 (grid-invariant)
                pl.BlockSpec((c4, c32), lambda k: (0, 0)),        # W2 (grid-invariant)
                pl.BlockSpec((1, c32), lambda k: (0, 0)),         # b2
                pl.BlockSpec((1, c32), lambda k: (0, 0)),         # W3 row
                pl.BlockSpec((1, 1), lambda k: (0, 0)),           # b3
            ],
            out_specs=pl.BlockSpec((b, 1), lambda k: (0, 0)),     # written once
            scratch_shapes=[pltpu.VMEM((b, c4), jnp.float32)],    # K accumulator
        ),
        compiler_params=pltpu.CompilerParams(
            dimension_semantics=("arbitrary",),                   # K is a reduction
            vmem_limit_bytes=64 * 1024 * 1024,
        ),
    )(x, w1, b1, w2, b2, w3_row, b3)


def vqa_network_forward(feat_3d, swin_feature, convnext_feature, params):
    """Reproduces VQA_Network.forward glue + head.

    feat_3d          : (b, t, C_3d)   -- input_feature['feat']
    swin_feature     : (b*t, C_swin)  -- backbone(sal_feature) output
    convnext_feature : (b*t, C_conv)  -- sal_backbone(frame_feature) output
    """
    b, t, c3d = feat_3d.shape
    # x_3d_features = feat.view(-1, feat.shape[2])
    x3d = feat_3d.reshape(b * t, c3d)
    # x = torch.cat((out_feature, x_3d_features, sal_feature), dim=1)
    x = jnp.concatenate((swin_feature, x3d, convnext_feature), axis=1)
    # x = x.view(b, t, -1)
    x = x.reshape(b, t, -1)
    # scores = self.head(x)
    return vqa_head_pallas(x, *params)


def _reference_head(x, w1, b1, w2, b2, w3_row, b3):
    """Pure-JAX reference in the original PyTorch op order (mean AFTER linears)."""
    h = x @ w1 + b1
    h = h @ w2 + b2
    h = h @ w3_row.T + b3          # (b, t, 1)
    return jnp.mean(h, axis=1)     # (b, 1)


if __name__ == "__main__":
    # Small shapes consistent with the module's structure.
    # Real model: C_swin=4224, C_3d=2304, C_conv=2688 -> C=9216, C4=2304, C32=288.
    # Scaled down here, keeping the C -> C//4 -> C//32 -> 1 head structure.
    B, T = 2, 8
    C_SWIN, C_3D, C_CONV = 128, 64, 64
    C = C_SWIN + C_3D + C_CONV          # 256
    C4, C32 = C // 4, C // 32           # 64, 8

    key = jax.random.PRNGKey(0)
    keys = jax.random.split(key, 9)

    # Synthetic backbone outputs / 3D features (deterministic).
    feat_3d = jax.random.normal(keys[0], (B, T, C_3D), dtype=jnp.float32)
    swin_feature = jax.random.normal(keys[1], (B * T, C_SWIN), dtype=jnp.float32)
    convnext_feature = jax.random.normal(keys[2], (B * T, C_CONV), dtype=jnp.float32)

    # Deterministic head parameters. w1/w2 stored (in, out); w3 stored as the
    # nn.Linear-native (out=1, in=C32) row; biases (1, out).
    def init_linear_t(kw, kb, fan_in, fan_out):
        bound = 1.0 / jnp.sqrt(fan_in)
        w = jax.random.uniform(kw, (fan_in, fan_out), jnp.float32, -bound, bound)
        b = jax.random.uniform(kb, (1, fan_out), jnp.float32, -bound, bound)
        return w, b

    w1, b1 = init_linear_t(keys[3], keys[4], C, C4)
    w2, b2 = init_linear_t(keys[5], keys[6], C4, C32)
    w3_t, b3 = init_linear_t(keys[7], keys[8], C32, 1)
    w3_row = w3_t.T                      # (1, C32): final-layer weight as a row
    params = (w1, b1, w2, b2, w3_row, b3)

    # Run with block_k=128 so the demo exercises the K-streaming accumulation
    # path (nk = 2) that production shapes (C=9216, tk=512 -> nk=18) rely on.
    b_, t_, _ = feat_3d.shape
    x_full = jnp.concatenate(
        (swin_feature, feat_3d.reshape(B * T, C_3D), convnext_feature), axis=1
    ).reshape(B, T, C)
    scores = vqa_head_pallas(x_full, *params, block_k=128)
    scores = jax.block_until_ready(scores)

    # Also exercise the full glue wrapper (auto block_k).
    scores_wrapper = vqa_network_forward(feat_3d, swin_feature, convnext_feature,
                                         params)
    scores_wrapper = jax.block_until_ready(scores_wrapper)

    # Cross-check against a pure-JAX reference of the head (original op order).
    expected = _reference_head(x_full, *params)
    assert scores.shape == (B, 1)
    assert jnp.allclose(scores, expected, atol=1e-4, rtol=1e-4), (scores, expected)
    assert jnp.allclose(scores_wrapper, expected, atol=1e-4, rtol=1e-4), (
        scores_wrapper, expected)

    print("KERNEL_OK")
</pallas_src>

<mosaic_0001>
module attributes {stable_mosaic.version = 11 : i64} {
  func.func @_head_kernel(%arg0: i32, %arg1: memref<2x8x128xf32, #tpu.memory_space<vmem>>, %arg2: memref<128x64xf32, #tpu.memory_space<vmem>>, %arg3: memref<1x64xf32, #tpu.memory_space<vmem>>, %arg4: memref<64x8xf32, #tpu.memory_space<vmem>>, %arg5: memref<1x8xf32, #tpu.memory_space<vmem>>, %arg6: memref<1x8xf32, #tpu.memory_space<vmem>>, %arg7: memref<1x1xf32, #tpu.memory_space<vmem>>, %arg8: memref<2x1xf32, #tpu.memory_space<vmem>>, %arg9: memref<2x64xf32, #tpu.memory_space<vmem>>) attributes {dimension_semantics = [#tpu.dimension_semantics<arbitrary>], iteration_bounds = array<i64: 2>, scalar_prefetch = 0 : i64, scratch_operands = 1 : i64, tpu.core_type = #tpu.core_type<tc>, window_params = [{transform_indices = @transform_0, window_bounds = array<i64: 2, 8, 128>}, {transform_indices = @transform_1, window_bounds = array<i64: 128, 64>}, {pipeline_mode = #tpu.pipeline_mode<synchronous>, transform_indices = @transform_2, window_bounds = array<i64: 1, 64>}, {pipeline_mode = #tpu.pipeline_mode<synchronous>, transform_indices = @transform_3, window_bounds = array<i64: 64, 8>}, {pipeline_mode = #tpu.pipeline_mode<synchronous>, transform_indices = @transform_4, window_bounds = array<i64: 1, 8>}, {pipeline_mode = #tpu.pipeline_mode<synchronous>, transform_indices = @transform_5, window_bounds = array<i64: 1, 8>}, {pipeline_mode = #tpu.pipeline_mode<synchronous>, transform_indices = @transform_6, window_bounds = array<i64: 1, 1>}, {pipeline_mode = #tpu.pipeline_mode<synchronous>, transform_indices = @transform_7, window_bounds = array<i64: 2, 1>}]} {
    %c0_i32 = arith.constant 0 : i32
    %0 = arith.cmpi eq, %arg0, %c0_i32 : i32
    %1 = arith.extui %0 : i1 to i32
    %c0_i32_0 = arith.constant 0 : i32
    %2 = arith.cmpi ne, %1, %c0_i32_0 : i32
    scf.if %2 {
      %cst_12 = arith.constant 0.000000e+00 : f32
      %15 = vector.broadcast %cst_12 : f32 to vector<2x64xf32>
      %c0_13 = arith.constant 0 : index
      %c0_14 = arith.constant 0 : index
      %16 = vector.load %arg9[%c0_13, %c0_14] : memref<2x64xf32, #tpu.memory_space<vmem>>, vector<2x64xf32>
      tpu.vector_store %arg9[%c0_13, %c0_14], %15 {strides = array<i32>} : memref<2x64xf32, #tpu.memory_space<vmem>>, vector<2x64xf32>,
    } else {
    }
    %c0 = arith.constant 0 : index
    %c0_1 = arith.constant 0 : index
    %c0_2 = arith.constant 0 : index
    %3 = vector.load %arg1[%c0, %c0_1, %c0_2] : memref<2x8x128xf32, #tpu.memory_space<vmem>>, vector<2x8x128xf32>
    %cst = arith.constant dense<0.000000e+00> : vector<2x128xf32>
    %4 = vector.multi_reduction <add>, %3, %cst [1] : vector<2x8x128xf32> to vector<2x128xf32>
    %cst_3 = arith.constant 8.000000e+00 : f32
    %5 = vector.broadcast %cst_3 : f32 to vector<2x128xf32>
    %6 = arith.divf %4, %5 : vector<2x128xf32>
    %c0_4 = arith.constant 0 : index
    %c0_5 = arith.constant 0 : index
    %7 = vector.load %arg9[%c0_4, %c0_5] : memref<2x64xf32, #tpu.memory_space<vmem>>, vector<2x64xf32>
    %c0_6 = arith.constant 0 : index
    %c0_7 = arith.constant 0 : index
    %8 = vector.load %arg2[%c0_6, %c0_7] : memref<128x64xf32, #tpu.memory_space<vmem>>, vector<128x64xf32>
    %cst_8 = arith.constant dense<0.000000e+00> : vector<2x64xf32>
    %9 = tpu.matmul %6, %8, %cst_8 {dimension_numbers = #tpu.dot_dimension_numbers<[1], [0], [0], [1], [0, 0, 1, 1], [], []>} : vector<2x128xf32>, vector<128x64xf32>, vector<2x64xf32> -> vector<2x64xf32>
    %10 = arith.addf %7, %9 : vector<2x64xf32>
    %c0_9 = arith.constant 0 : index
    %c0_10 = arith.constant 0 : index
    %11 = vector.load %arg9[%c0_9, %c0_10] : memref<2x64xf32, #tpu.memory_space<vmem>>, vector<2x64xf32>
    tpu.vector_store %arg9[%c0_9, %c0_10], %10 {strides = array<i32>} : memref<2x64xf32, #tpu.memory_space<vmem>>, vector<2x64xf32>,
    %c1_i32 = arith.constant 1 : i32
    %12 = arith.cmpi eq, %arg0, %c1_i32 : i32
    %13 = arith.extui %12 : i1 to i32
    %c0_i32_11 = arith.constant 0 : i32
    %14 = arith.cmpi ne, %13, %c0_i32_11 : i32
    scf.if %14 {
      %c0_12 = arith.constant 0 : index
      %c0_13 = arith.constant 0 : index
      %15 = vector.load %arg9[%c0_12, %c0_13] : memref<2x64xf32, #tpu.memory_space<vmem>>, vector<2x64xf32>
      %c0_14 = arith.constant 0 : index
      %c0_15 = arith.constant 0 : index
      %16 = vector.load %arg3[%c0_14, %c0_15] : memref<1x64xf32, #tpu.memory_space<vmem>>, vector<1x64xf32>
      %17 = vector.broadcast %16 : vector<1x64xf32> to vector<2x64xf32>
      %18 = arith.addf %15, %17 : vector<2x64xf32>
      %c0_16 = arith.constant 0 : index
      %c0_17 = arith.constant 0 : index
      %19 = vector.load %arg4[%c0_16, %c0_17] : memref<64x8xf32, #tpu.memory_space<vmem>>, vector<64x8xf32>
      %cst_18 = arith.constant dense<0.000000e+00> : vector<2x8xf32>
      %20 = tpu.matmul %18, %19, %cst_18 {dimension_numbers = #tpu.dot_dimension_numbers<[1], [0], [0], [1], [0, 0, 1, 1], [], []>} : vector<2x64xf32>, vector<64x8xf32>, vector<2x8xf32> -> vector<2x8xf32>
      %c0_19 = arith.constant 0 : index
      %c0_20 = arith.constant 0 : index
      %21 = vector.load %arg5[%c0_19, %c0_20] : memref<1x8xf32, #tpu.memory_space<vmem>>, vector<1x8xf32>
      %22 = vector.broadcast %21 : vector<1x8xf32> to vector<2x8xf32>
      %23 = arith.addf %20, %22 : vector<2x8xf32>
      %c0_21 = arith.constant 0 : index
      %c0_22 = arith.constant 0 : index
      %24 = vector.load %arg6[%c0_21, %c0_22] : memref<1x8xf32, #tpu.memory_space<vmem>>, vector<1x8xf32>
      %25 = vector.broadcast %24 : vector<1x8xf32> to vector<2x8xf32>
      %26 = arith.mulf %23, %25 : vector<2x8xf32>
      %cst_23 = arith.constant dense<0.000000e+00> : vector<2xf32>
      %27 = vector.multi_reduction <add>, %26, %cst_23 [1] : vector<2x8xf32> to vector<2xf32>
      %28 = vector.shape_cast %27 : vector<2xf32> to vector<2x1xf32>
      %c0_24 = arith.constant 0 : index
      %c0_25 = arith.constant 0 : index
      %29 = vector.load %arg7[%c0_24, %c0_25] : memref<1x1xf32, #tpu.memory_space<vmem>>, vector<1x1xf32>
      %30 = vector.broadcast %29 : vector<1x1xf32> to vector<2x1xf32>
      %31 = arith.addf %28, %30 : vector<2x1xf32>
      %c0_26 = arith.constant 0 : index
      %c0_27 = arith.constant 0 : index
      %32 = vector.load %arg8[%c0_26, %c0_27] : memref<2x1xf32, #tpu.memory_space<vmem>>, vector<2x1xf32>
      tpu.vector_store %arg8[%c0_26, %c0_27], %31 {strides = array<i32>} : memref<2x1xf32, #tpu.memory_space<vmem>>, vector<2x1xf32>,
    } else {
    }
    return
  }
  func.func @transform_0(%arg0: i32) -> (i32, i32, i32) {
    %c0_i32 = arith.constant 0 : i32
    %c0_i32_0 = arith.constant 0 : i32
    %c0_i32_1 = arith.constant 0 : i32
    return %c0_i32, %c0_i32_0, %arg0 : i32, i32, i32
  }
  func.func @transform_1(%arg0: i32) -> (i32, i32) {
    %c0_i32 = arith.constant 0 : i32
    %c0_i32_0 = arith.constant 0 : i32
    return %arg0, %c0_i32 : i32, i32
  }
  func.func @transform_2(%arg0: i32) -> (i32, i32) {
    %c0_i32 = arith.constant 0 : i32
    %c0_i32_0 = arith.constant 0 : i32
    %c0_i32_1 = arith.constant 0 : i32
    return %c0_i32, %c0_i32_0 : i32, i32
  }
  func.func @transform_3(%arg0: i32) -> (i32, i32) {
    %c0_i32 = arith.constant 0 : i32
    %c0_i32_0 = arith.constant 0 : i32
    %c0_i32_1 = arith.constant 0 : i32
    return %c0_i32, %c0_i32_0 : i32, i32
  }
  func.func @transform_4(%arg0: i32) -> (i32, i32) {
    %c0_i32 = arith.constant 0 : i32
    %c0_i32_0 = arith.constant 0 : i32
    %c0_i32_1 = arith.constant 0 : i32
    return %c0_i32, %c0_i32_0 : i32, i32
  }
  func.func @transform_5(%arg0: i32) -> (i32, i32) {
    %c0_i32 = arith.constant 0 : i32
    %c0_i32_0 = arith.constant 0 : i32
    %c0_i32_1 = arith.constant 0 : i32
    return %c0_i32, %c0_i32_0 : i32, i32
  }
  func.func @transform_6(%arg0: i32) -> (i32, i32) {
    %c0_i32 = arith.constant 0 : i32
    %c0_i32_0 = arith.constant 0 : i32
    %c0_i32_1 = arith.constant 0 : i32
    return %c0_i32, %c0_i32_0 : i32, i32
  }
  func.func @transform_7(%arg0: i32) -> (i32, i32) {
    %c0_i32 = arith.constant 0 : i32
    %c0_i32_0 = arith.constant 0 : i32
    %c0_i32_1 = arith.constant 0 : i32
    return %c0_i32, %c0_i32_0 : i32, i32
  }
}

</mosaic_0001>

<llo_original>
// kernel: tpu_custom_call.1
$region0: #{tpu_custom_call.1}
  #allocation0 [shape = 'u32[]', space=smem, size = 0x4, offset = 0x4, fixed_abs, tag = 'smem constant byte address 0x4 - core index']
  #allocation1 [shape = 'u32[72,128]{1,0:T(1,128)}', space=vmem, size = 0x9000, scoped, tag = 'internal scratch']
  #allocation2 [shape = 'f32[2,64]{1,0:T(2,128)}', space=vmem, size = 0x400, scoped, tag = 'scratch operand']
  #allocation3 [shape = 'f32[1,1]{1,0:T(1,128)S(1)}', space=vmem, size = 0x200, scoped, tag = 'scoped memory for tpu_custom_call.1']
  %s0 = inlined_call_operand.vmem [shape: f32[2,8,256], index: 0, kind: input, shape index: {}]
  %s1 = inlined_call_operand.vmem [shape: f32[256,64], index: 1, kind: input, shape index: {}]
  %s2 = inlined_call_operand.vmem [shape: f32[1,64], index: 2, kind: input, shape index: {}]
  %s3 = inlined_call_operand.vmem [shape: f32[64,8], index: 3, kind: input, shape index: {}]
  %s4 = inlined_call_operand.vmem [shape: f32[1,8], index: 4, kind: input, shape index: {}]
  %s5 = inlined_call_operand.vmem [shape: f32[1,8], index: 5, kind: input, shape index: {}]
  %s6 = inlined_call_operand.<no memory space> [shape: f32[1,1], index: 6, kind: input, shape index: {}]
  %s7 = inlined_call_operand.vmem [shape: f32[2,1], index: 7, kind: output, shape index: {}]
  %s8 = sld [smem:[#allocation0]]
  $region107: #{tpu_custom_call.1} parent=0
    _
  %s10 = ssub.s32 1, %s8
  %s11 = scalar_select 0, %s10, %s8
  %v12 = vstv %s6
  %13 = vst [vmem:[#allocation3] sm:$0x1] %v12
  $region1: #{tpu_custom_call.1} parent=0
    #allocation4 [shape = 'u8[16384]{0}', space=vmem, size = 0x4000, scoped, tag = 'input window, operand 0']
    loop: start=0, step=1, limit=4
    $region2: #{tpu_custom_call.1} parent=1 // loop_pre_header
      _
    $region3: #{tpu_custom_call.1} parent=1 // loop_header
      %s15 = sphi 0, %s19
      %p16 = scmp.ge.s32.totalorder %s15, 4
      %s25 = sphi 0, %s27
      %s28 = sphi 0, %s25
      %s29 = sphi 0, %s28
      %s45 = sphi 0, %s29
      %s51 = sphi 0, %s53
      %s54 = sphi 0, %s51
      %s55 = sphi 0, %s54
      %s71 = sphi 0, %s55
      %s75 = sphi 0, %s75
      %s77 = sphi 0, %s75
      %s78 = sphi 0, %s77
      %s92 = sphi 0, %s78
      %s96 = sphi 0, %s96
      %s98 = sphi 0, %s96
      %s99 = sphi 0, %s98
      %s113 = sphi 0, %s99
      %s117 = sphi 0, %s117
      %s119 = sphi 0, %s117
      %s120 = sphi 0, %s119
      %s134 = sphi 0, %s120
      %s138 = sphi 0, %s138
      %s140 = sphi 0, %s138
      %s141 = sphi 0, %s140
      %s155 = sphi 0, %s141
      %s159 = sphi 0, %s159
      %s161 = sphi 0, %s159
      %s162 = sphi 0, %s161
      %s176 = sphi 0, %s162
      %s180 = sphi 0, %s180
      %s182 = sphi 0, %s180
      %s183 = sphi 0, %s182
      %s197 = sphi 0, %s183
    $region4: #{tpu_custom_call.1} parent=1 // loop_header_branch
      %18 = sbr.rel (%p16) target = $region8
    $region5: #{tpu_custom_call.1} parent=1 // loop_body
      %s20 = ssub.s32 %s15, 1
      %s21 = ssub.s32 %s15, 2
      %s22 = sadd.s32 %s15, 1
      %s23 = ssub.s32 %s15, %s22
      %p24 = scmp.eq.s32.totalorder %s23, 0
      %s26 = sadd.s32 %s25, 1
      %s27 = scalar_select %p24, %s25, %s26
      %p30 = pneg %p24
      %p31 = scmp.eq.s32.totalorder %s15, 1
      %p32 = por %p30, %p31
      %p33 = scmp.ne.s32.totalorder %s25, %s28
      %p34 = scmp.eq.s32.totalorder %s15, 0
      %p35 = por %p33, %p34
      %p36 = scmp.ne.s32.totalorder %s25, %s28
      %p37 = scmp.eq.s32.totalorder %s20, 1
      %p38 = por %p36, %p37
      %p39 = scmp.ne.s32.totalorder %s28, %s29
      %p40 = scmp.eq.s32.totalorder %s20, 0
      %p41 = por %p39, %p40
      %p42 = scmp.ne.s32.totalorder %s28, %s29
      %p43 = scmp.eq.s32.totalorder %s21, 1
      %p44 = por %p42, %p43
      %p46 = scmp.ne.s32.totalorder %s29, %s45
      %p47 = scmp.eq.s32.totalorder %s21, 0
      %p48 = por %p46, %p47
      %s49 = ssub.s32 %s15, %s22
      %p50 = scmp.eq.s32.totalorder %s49, 0
      %s52 = sadd.s32 %s51, 1
      %s53 = scalar_select %p50, %s51, %s52
      %p56 = pneg %p50
      %p57 = scmp.eq.s32.totalorder %s15, 1
      %p58 = por %p56, %p57
      %p59 = scmp.ne.s32.totalorder %s51, %s54
      %p60 = scmp.eq.s32.totalorder %s15, 0
      %p61 = por %p59, %p60
      %p62 = scmp.ne.s32.totalorder %s51, %s54
      %p63 = scmp.eq.s32.totalorder %s20, 1
      %p64 = por %p62, %p63
      %p65 = scmp.ne.s32.totalorder %s54, %s55
      %p66 = scmp.eq.s32.totalorder %s20, 0
      %p67 = por %p65, %p66
      %p68 = scmp.ne.s32.totalorder %s54, %s55
      %p69 = scmp.eq.s32.totalorder %s21, 1
      %p70 = por %p68, %p69
      %p72 = scmp.ne.s32.totalorder %s55, %s71
      %p73 = scmp.eq.s32.totalorder %s21, 0
      %p74 = por %p72, %p73
      %s76 = sadd.s32 %s75, 1
      %p79 = scmp.eq.s32.totalorder %s15, 1
      %p80 = scmp.ne.s32.totalorder %s75, %s77
      %p81 = scmp.eq.s32.totalorder %s15, 0
      %p82 = por %p80, %p81
      %p83 = scmp.ne.s32.totalorder %s75, %s77
      %p84 = scmp.eq.s32.totalorder %s20, 1
      %p85 = por %p83, %p84
      %p86 = scmp.ne.s32.totalorder %s77, %s78
      %p87 = scmp.eq.s32.totalorder %s20, 0
      %p88 = por %p86, %p87
      %p89 = scmp.ne.s32.totalorder %s77, %s78
      %p90 = scmp.eq.s32.totalorder %s21, 1
      %p91 = por %p89, %p90
      %p93 = scmp.ne.s32.totalorder %s78, %s92
      %p94 = scmp.eq.s32.totalorder %s21, 0
      %p95 = por %p93, %p94
      %s97 = sadd.s32 %s96, 1
      %p100 = scmp.eq.s32.totalorder %s15, 1
      %p101 = scmp.ne.s32.totalorder %s96, %s98
      %p102 = scmp.eq.s32.totalorder %s15, 0
      %p103 = por %p101, %p102
      %p104 = scmp.ne.s32.totalorder %s96, %s98
      %p105 = scmp.eq.s32.totalorder %s20, 1
      %p106 = por %p104, %p105
      %p107 = scmp.ne.s32.totalorder %s98, %s99
      %p108 = scmp.eq.s32.totalorder %s20, 0
      %p109 = por %p107, %p108
      %p110 = scmp.ne.s32.totalorder %s98, %s99
      %p111 = scmp.eq.s32.totalorder %s21, 1
      %p112 = por %p110, %p111
      %p114 = scmp.ne.s32.totalorder %s99, %s113
      %p115 = scmp.eq.s32.totalorder %s21, 0
      %p116 = por %p114, %p115
      %s118 = sadd.s32 %s117, 1
      %p121 = scmp.eq.s32.totalorder %s15, 1
      %p122 = scmp.ne.s32.totalorder %s117, %s119
      %p123 = scmp.eq.s32.totalorder %s15, 0
      %p124 = por %p122, %p123
      %p125 = scmp.ne.s32.totalorder %s117, %s119
      %p126 = scmp.eq.s32.totalorder %s20, 1
      %p127 = por %p125, %p126
      %p128 = scmp.ne.s32.totalorder %s119, %s120
      %p129 = scmp.eq.s32.totalorder %s20, 0
      %p130 = por %p128, %p129
      %p131 = scmp.ne.s32.totalorder %s119, %s120
      %p132 = scmp.eq.s32.totalorder %s21, 1
      %p133 = por %p131, %p132
      %p135 = scmp.ne.s32.totalorder %s120, %s134
      %p136 = scmp.eq.s32.totalorder %s21, 0
      %p137 = por %p135, %p136
      %s139 = sadd.s32 %s138, 1
      %p142 = scmp.eq.s32.totalorder %s15, 1
      %p143 = scmp.ne.s32.totalorder %s138, %s140
      %p144 = scmp.eq.s32.totalorder %s15, 0
      %p145 = por %p143, %p144
      %p146 = scmp.ne.s32.totalorder %s138, %s140
      %p147 = scmp.eq.s32.totalorder %s20, 1
      %p148 = por %p146, %p147
      %p149 = scmp.ne.s32.totalorder %s140, %s141
      %p150 = scmp.eq.s32.totalorder %s20, 0
      %p151 = por %p149, %p150
      %p152 = scmp.ne.s32.totalorder %s140, %s141
      %p153 = scmp.eq.s32.totalorder %s21, 1
      %p154 = por %p152, %p153
      %p156 = scmp.ne.s32.totalorder %s141, %s155
      %p157 = scmp.eq.s32.totalorder %s21, 0
      %p158 = por %p156, %p157
      %s160 = sadd.s32 %s159, 1
      %p163 = scmp.eq.s32.totalorder %s15, 1
      %p164 = scmp.ne.s32.totalorder %s159, %s161
      %p165 = scmp.eq.s32.totalorder %s15, 0
      %p166 = por %p164, %p165
      %p167 = scmp.ne.s32.totalorder %s159, %s161
      %p168 = scmp.eq.s32.totalorder %s20, 1
      %p169 = por %p167, %p168
      %p170 = scmp.ne.s32.totalorder %s161, %s162
      %p171 = scmp.eq.s32.totalorder %s20, 0
      %p172 = por %p170, %p171
      %p173 = scmp.ne.s32.totalorder %s161, %s162
      %p174 = scmp.eq.s32.totalorder %s21, 1
      %p175 = por %p173, %p174
      %p177 = scmp.ne.s32.totalorder %s162, %s176
      %p178 = scmp.eq.s32.totalorder %s21, 0
      %p179 = por %p177, %p178
      %s181 = sadd.s32 %s180, 1
      %p184 = scmp.eq.s32.totalorder %s15, 1
      %p185 = scmp.ne.s32.totalorder %s180, %s182
      %p186 = scmp.eq.s32.totalorder %s15, 0
      %p187 = por %p185, %p186
      %p188 = scmp.ne.s32.totalorder %s180, %s182
      %p189 = scmp.eq.s32.totalorder %s20, 1
      %p190 = por %p188, %p189
      %p191 = scmp.ne.s32.totalorder %s182, %s183
      %p192 = scmp.eq.s32.totalorder %s20, 0
      %p193 = por %p191, %p192
      %p194 = scmp.ne.s32.totalorder %s182, %s183
      %p195 = scmp.eq.s32.totalorder %s21, 1
      %p196 = por %p194, %p195
      %p198 = scmp.ne.s32.totalorder %s183, %s197
      %p199 = scmp.eq.s32.totalorder %s21, 0
      %p200 = por %p198, %p199
      %p201 = scmp.le.s32.totalorder 1, %s15
      %p202 = scmp.lt.s32.totalorder %s15, 3
      %p203 = pnand %p201, %p202
      %p204 = pneg %p203
      // Predicated region
      $region9: #{tpu_custom_call.1} parent=5 // pred_check
        _
      $region10: #{tpu_custom_call.1} parent=5 // pred_check_branch
        %206 = sbr.rel (%p203) target = $region12
      $region11: #{tpu_custom_call.1} parent=5 // pred_region
        %s207 = ssub.s32 %s15, 1
        // Predicated region
        $region13: #{tpu_custom_call.1} parent=11 // pred_check
          %p208 = pneg %p88
        $region14: #{tpu_custom_call.1} parent=11 // pred_check_branch
          %210 = sbr.rel (%p208) target = $region16
        $region15: #{tpu_custom_call.1} parent=11 // pred_region
          _
        $region16: #{tpu_custom_call.1} parent=11 // pred_fallthru
          _
        // Predicated region
        $region17: #{tpu_custom_call.1} parent=11 // pred_check
          %p211 = pneg %p109
        $region18: #{tpu_custom_call.1} parent=11 // pred_check_branch
          %213 = sbr.rel (%p211) target = $region20
        $region19: #{tpu_custom_call.1} parent=11 // pred_region
          _
        $region20: #{tpu_custom_call.1} parent=11 // pred_fallthru
          _
        // Predicated region
        $region21: #{tpu_custom_call.1} parent=11 // pred_check
          %p214 = pneg %p130
        $region22: #{tpu_custom_call.1} parent=11 // pred_check_branch
          %216 = sbr.rel (%p214) target = $region24
        $region23: #{tpu_custom_call.1} parent=11 // pred_region
          _
        $region24: #{tpu_custom_call.1} parent=11 // pred_fallthru
          _
        // Predicated region
        $region25: #{tpu_custom_call.1} parent=11 // pred_check
          %p217 = pneg %p151
        $region26: #{tpu_custom_call.1} parent=11 // pred_check_branch
          %219 = sbr.rel (%p217) target = $region28
        $region27: #{tpu_custom_call.1} parent=11 // pred_region
          _
        $region28: #{tpu_custom_call.1} parent=11 // pred_fallthru
          _
        // Predicated region
        $region29: #{tpu_custom_call.1} parent=11 // pred_check
          %p220 = pneg %p172
        $region30: #{tpu_custom_call.1} parent=11 // pred_check_branch
          %222 = sbr.rel (%p220) target = $region32
        $region31: #{tpu_custom_call.1} parent=11 // pred_region
          _
        $region32: #{tpu_custom_call.1} parent=11 // pred_fallthru
          _
      $region12: #{tpu_custom_call.1} parent=5 // pred_fallthru
        _
      %p223 = scmp.lt.s32.totalorder %s15, 2
      // Predicated region
      $region33: #{tpu_custom_call.1} parent=5 // pred_check
        %p224 = pneg %p223
      $region34: #{tpu_custom_call.1} parent=5 // pred_check_branch
        %226 = sbr.rel (%p224) target = $region36
      $region35: #{tpu_custom_call.1} parent=5 // pred_region
        // Predicated region
        $region37: #{tpu_custom_call.1} parent=35 // pred_check
          %p227 = pneg %p35
        $region38: #{tpu_custom_call.1} parent=35 // pred_check_branch
          %229 = sbr.rel (%p227) target = $region40
        $region39: #{tpu_custom_call.1} parent=35 // pred_region
          %s230 = sand.u32 %s25, 1
          %s231 = sand.u32 %s25, 1
          %s232 = smul.addr %s231, 16
          %s233 = scalar_lea.vmem [#allocation4], %s232
          %s234 = smul.addr %s15, 8
          %s235 = scalar_lea.vmem %s0, %s234
          // Predicated region
          $region41: #{tpu_custom_call.1} parent=39 // pred_check
            _
          $region42: #{tpu_custom_call.1} parent=39 // pred_check_branch
            %237 = sbr.rel (0) target = $region44
          $region43: #{tpu_custom_call.1} parent=39 // pred_region
            // Predicated region
            $region45: #{tpu_custom_call.1} parent=43 // pred_check
              _
            $region46: #{tpu_custom_call.1} parent=43 // pred_check_branch
              %239 = sbr.rel (0) target = $region48
            $region47: #{tpu_custom_call.1} parent=43 // pred_region
              // Predicated region
              $region60: #{tpu_custom_call.1} parent=47 // pred_check
                _
              $region61: #{tpu_custom_call.1} parent=47 // pred_check_branch
                %257 = sbr.rel (0) target = $region63
              $region62: #{tpu_custom_call.1} parent=47 // pred_region
                loop: start=0, step=1, limit=1
                $region64: #{tpu_custom_call.1} parent=62 // loop_pre_header
                  _
                $region65: #{tpu_custom_call.1} parent=62 // loop_header
                  %s259 = sphi 0, %s263
                  %p260 = scmp.ge.s32.totalorder %s259, 1
                  %s264 = sphi %s235, %s235
                  %s265 = sphi %s233, %s233
                $region66: #{tpu_custom_call.1} parent=62 // loop_header_branch
                  %262 = sbr.rel (%p260) target = $region70
                $region67: #{tpu_custom_call.1} parent=62 // loop_body
                  %v266 = vld [vmem:[%s264] sm:$0xff]
                  %267 = vst [vmem:[%s265] sm:$0xff] %v266
                  %v268 = vld [vmem:[%s264 + $0x10] sm:$0xff]
                  %269 = vst [vmem:[%s265 + $0x8] sm:$0xff] %v268
                $region68: #{tpu_custom_call.1} parent=62 // loop_footer
                  %s263 = sadd.s32 1, %s259
                $region69: #{tpu_custom_call.1} parent=62 // loop_footer_branch
                  %258 = sbr.rel target = $region65
                $region70: #{tpu_custom_call.1} parent=62 // loop_exit
                  _
              $region63: #{tpu_custom_call.1} parent=47 // pred_fallthru
                _
              // Predicated region
              $region71: #{tpu_custom_call.1} parent=47 // pred_check
                _
              $region72: #{tpu_custom_call.1} parent=47 // pred_check_branch
                %271 = sbr.rel target = $region74
              $region73: #{tpu_custom_call.1} parent=47 // pred_region
                _
              $region74: #{tpu_custom_call.1} parent=47 // pred_fallthru
                _
            $region48: #{tpu_custom_call.1} parent=43 // pred_fallthru
              _
            // Predicated region
            $region49: #{tpu_custom_call.1} parent=43 // pred_check
              _
            $region50: #{tpu_custom_call.1} parent=43 // pred_check_branch
              %241 = sbr.rel target = $region52
            $region51: #{tpu_custom_call.1} parent=43 // pred_region
              %s243 = ssub.s32 256, 1
              loop: start=0, step=1, limit=1
              $region53: #{tpu_custom_call.1} parent=51 // loop_pre_header
                _
              $region54: #{tpu_custom_call.1} parent=51 // loop_header
                %s245 = sphi 0, %s249
                %p246 = scmp.ge.s32.totalorder %s245, 1
                %s250 = sphi %s235, %s235
                %s251 = sphi %s233, %s233
              $region55: #{tpu_custom_call.1} parent=51 // loop_header_branch
                %248 = sbr.rel (%p246) target = $region59
              $region56: #{tpu_custom_call.1} parent=51 // loop_body
                %v252 = vld [vmem:[%s250] sm:%s243]
                %253 = vst [vmem:[%s251] sm:%s243] %v252
                %v254 = vld [vmem:[%s250 + $0x10] sm:%s243]
                %255 = vst [vmem:[%s251 + $0x8] sm:%s243] %v254
              $region57: #{tpu_custom_call.1} parent=51 // loop_footer
                %s249 = sadd.s32 1, %s245
              $region58: #{tpu_custom_call.1} parent=51 // loop_footer_branch
                %244 = sbr.rel target = $region54
              $region59: #{tpu_custom_call.1} parent=51 // loop_exit
                _
            $region52: #{tpu_custom_call.1} parent=43 // pred_fallthru
              _
          $region44: #{tpu_custom_call.1} parent=39 // pred_fallthru
            _
          %272 = vnop
        $region40: #{tpu_custom_call.1} parent=35 // pred_fallthru
          _
        // Predicated region
        $region75: #{tpu_custom_call.1} parent=35 // pred_check
          %p273 = pneg %p61
        $region76: #{tpu_custom_call.1} parent=35 // pred_check_branch
          %275 = sbr.rel (%p273) target = $region78
        $region77: #{tpu_custom_call.1} parent=35 // pred_region
          %s276 = smul.u32 16, %s15
          %p277 = scmp.lt.s32.totalorder %s276, 31
          %s278 = scalar_select %p277, %s276, 31
          %s279 = smul.addr %s278, 8
          %s280 = scalar_lea.vmem %s1, %s279
          %s281 = smul.u32 16, %s15
        $region78: #{tpu_custom_call.1} parent=35 // pred_fallthru
          _
      $region36: #{tpu_custom_call.1} parent=5 // pred_fallthru
        _
      %p282 = scmp.le.s32.totalorder 1, %s15
      %p283 = scmp.lt.s32.totalorder %s15, 3
      %p284 = pnand %p282, %p283
      %p285 = pneg %p284
      // Predicated region
      $region79: #{tpu_custom_call.1} parent=5 // pred_check
        _
      $region80: #{tpu_custom_call.1} parent=5 // pred_check_branch
        %287 = sbr.rel (%p284) target = $region82
      $region81: #{tpu_custom_call.1} parent=5 // pred_region
        %s288 = ssub.s32 %s15, 1
        %s289 = sand.u32 %s28, 1
        %s290 = sand.u32 %s28, 1
        %s291 = smul.addr %s290, 16
        %s292 = scalar_lea.vmem [#allocation4], %s291
        // Predicated region
        $region83: #{tpu_custom_call.1} parent=81 // pred_check
          %p293 = pneg %p41
        $region84: #{tpu_custom_call.1} parent=81 // pred_check_branch
          %295 = sbr.rel (%p293) target = $region86
        $region85: #{tpu_custom_call.1} parent=81 // pred_region
          _
        $region86: #{tpu_custom_call.1} parent=81 // pred_fallthru
          _
        %s296 = sand.u32 %s28, 1
        %s297 = sand.u32 %s28, 1
        %s298 = smul.addr %s297, 16
        %s299 = scalar_lea.vmem [#allocation4], %s298
        %p300 = pneg %p41
        %p301 = pneg %p38
        %s302 = smul.u32 16, %s20
        %p303 = scmp.lt.s32.totalorder %s302, 31
        %s304 = scalar_select %p303, %s302, 31
        %s305 = smul.addr %s304, 8
        %s306 = scalar_lea.vmem %s1, %s305
        %p307 = pneg %p67
        %p308 = pneg %p64
        %p309 = pneg %p88
        %p310 = pneg %p85
        %p311 = pneg %p109
        %p312 = pneg %p106
        %p313 = pneg %p130
        %p314 = pneg %p127
        %p315 = pneg %p151
        %p316 = pneg %p148
        %p317 = pneg %p172
        %p318 = pneg %p169
        %p319 = pneg %p193
        %p320 = pneg %p190
        %s321 = smul.u32 16, %s20
        %p322 = scmp.lt.s32.totalorder %s321, 31
        %s323 = scalar_select %p322, %s321, 31
        %s324 = smul.addr %s323, 8
        %s325 = scalar_lea.vmem %s1, %s324
        %s326 = smul.u32 16, %s20
        %p327 = scmp.eq.s32.totalorder %s20, 0
        // Predicated region
        $region87: #{tpu_custom_call.1} parent=81 // pred_check
          %p328 = pneg %p327
        $region88: #{tpu_custom_call.1} parent=81 // pred_check_branch
          %330 = sbr.rel (%p328) target = $region90
        $region89: #{tpu_custom_call.1} parent=81 // pred_region
          %vm331 = vcmask 517120
          %332 = vst.msk [vmem:[#allocation2] sm:$0x3] %vm331, 0.0
        $region90: #{tpu_custom_call.1} parent=81 // pred_fallthru
          _
        %v333 = vld [vmem:[%s292] sm:$0xff]
        %v334 = vld [vmem:[%s292 + $0x8] sm:$0xff]
        %v335 = vrot.slane %v333, 4
        %v336 = vadd.f32 %v333, %v335
        %v337 = vrot.slane %v336, 2
        %v338 = vadd.f32 %v336, %v337
        %v339 = vrot.slane %v338, 1
        %v340 = vadd.f32 %v338, %v339
        %v341 = vrot.slane %v334, 4
        %v342 = vadd.f32 %v334, %v341
        %v343 = vrot.slane %v342, 2
        %v344 = vadd.f32 %v342, %v343
        %v345 = vrot.slane %v344, 1
        %v346 = vadd.f32 %v344, %v345
        %v347 = vrcp.pop 8.0
        %v348 = vmul.f32 8.0, %v347
        %v349 = vsub.f32 1.0, %v348
        %v350 = vmul.f32 %v347, %v349
        %v351 = vadd.f32 %v347, %v350
        %vm352 = vweird.f32 %v347
        %v353 = vsel %vm352, %v347, %v351
        %v354 = vmul.f32 %v340, %v353
        %v355 = vmul.f32 %v346, %v353
        %v356 = vld [vmem:[#allocation2] sm:$0x3]
        %v357 = vld [vmem:[%s325] sm:$0xff]
        %v358 = vld [vmem:[%s325 + $0x8] sm:$0xff]
        %v359 = vld [vmem:[%s325 + $0x10] sm:$0xff]
        %v360 = vld [vmem:[%s325 + $0x18] sm:$0xff]
        %v361 = vld [vmem:[%s325 + $0x20] sm:$0xff]
        %v362 = vld [vmem:[%s325 + $0x28] sm:$0xff]
        %v363 = vld [vmem:[%s325 + $0x30] sm:$0xff]
        %v364 = vld [vmem:[%s325 + $0x38] sm:$0xff]
        %v365 = vld [vmem:[%s325 + $0x40] sm:$0xff]
        %v366 = vld [vmem:[%s325 + $0x48] sm:$0xff]
        %v367 = vld [vmem:[%s325 + $0x50] sm:$0xff]
        %v368 = vld [vmem:[%s325 + $0x58] sm:$0xff]
        %v369 = vld [vmem:[%s325 + $0x60] sm:$0xff]
        %v370 = vld [vmem:[%s325 + $0x68] sm:$0xff]
        %v371 = vld [vmem:[%s325 + $0x70] sm:$0xff]
        %v372 = vld [vmem:[%s325 + $0x78] sm:$0xff]
        %vm375 = vcmask 1041409
        %v376 = vsel %vm375, %v355, %v354
        %378 = vmatpush.msra.mxu0 %v372
        %379 = vmatpush.msra.mxu0 %v371
        %380 = vmatpush.msra.mxu0 %v370
        %381 = vmatpush.msra.mxu0 %v369
        %382 = vmatpush.msra.mxu0 %v368
        %383 = vmatpush.msra.mxu0 %v367
        %384 = vmatpush.msra.mxu0 %v366
        %385 = vmatpush.msra.mxu0 %v365
        %386 = vmatpush.msra.mxu0 %v364
        %387 = vmatpush.msra.mxu0 %v363
        %388 = vmatpush.msra.mxu0 %v362
        %389 = vmatpush.msra.mxu0 %v361
        %390 = vmatpush.msra.mxu0 %v360
        %391 = vmatpush.msra.mxu0 %v359
        %392 = vmatpush.msra.mxu0 %v358
        %393 = vmatpush.msra.mxu0 %v357
        %394 = vmatmul.f32.gmra.mxu0 %v376
        %v395 = vpop.f32.mrf.mxu0
        %v396 = vadd.f32 0.0, %v395
        %397 = vdwg.mxu0
        %v398 = vadd.f32 %v356, %v396
        %vm399 = vcmask 517120
        %400 = vst.msk [vmem:[#allocation2] sm:$0x3] %vm399, %v398
        %p401 = scmp.eq.s32.totalorder %s20, 1
        // Predicated region
        $region91: #{tpu_custom_call.1} parent=81 // pred_check
          %p402 = pneg %p401
        $region92: #{tpu_custom_call.1} parent=81 // pred_check_branch
          %404 = sbr.rel (%p402) target = $region94
        $region93: #{tpu_custom_call.1} parent=81 // pred_region
          %v405 = vld [vmem:[#allocation2] sm:$0x3]
          %v406 = vld [vmem:[%s2] sm:$0x1]
          %v408 = vperm.slane %v406, 0
          %v410 = vadd.f32 %v405, %v408
          %v411 = vld [vmem:[%s3] sm:$0xff]
          %v412 = vld [vmem:[%s3 + $0x8] sm:$0xff]
          %v413 = vld [vmem:[%s3 + $0x10] sm:$0xff]
          %v414 = vld [vmem:[%s3 + $0x18] sm:$0xff]
          %v415 = vld [vmem:[%s3 + $0x20] sm:$0xff]
          %v416 = vld [vmem:[%s3 + $0x28] sm:$0xff]
          %v417 = vld [vmem:[%s3 + $0x30] sm:$0xff]
          %v418 = vld [vmem:[%s3 + $0x38] sm:$0xff]
          %v419 = vld [vmem:[%s4] sm:$0x1]
          %v421 = vperm.slane %v419, 0
          %vm423 = vcmask 523264
          %v425 = vsel %vm423, %v410, 0
          %427 = vmatpush.msra.mxu0 0.0
          %428 = vmatpush.msra.mxu0 0.0
          %429 = vmatpush.msra.mxu0 0.0
          %430 = vmatpush.msra.mxu0 0.0
          %431 = vmatpush.msra.mxu0 0.0
          %432 = vmatpush.msra.mxu0 0.0
          %433 = vmatpush.msra.mxu0 0.0
          %434 = vmatpush.msra.mxu0 0.0
          %435 = vmatpush.msra.mxu0 %v418
          %436 = vmatpush.msra.mxu0 %v417
          %437 = vmatpush.msra.mxu0 %v416
          %438 = vmatpush.msra.mxu0 %v415
          %439 = vmatpush.msra.mxu0 %v414
          %440 = vmatpush.msra.mxu0 %v413
          %441 = vmatpush.msra.mxu0 %v412
          %442 = vmatpush.msra.mxu0 %v411
          %443 = vmatmul.f32.gmra.mxu0 %v425
          %v444 = vpop.f32.mrf.mxu0
          %v445 = vadd.f32 %v421, %v444
          %446 = vdwg.mxu0
          %v447 = vld [vmem:[%s5] sm:$0x1]
          %v449 = vperm.slane %v447, 0
          %v451 = vmul.f32 %v445, %v449
          %vm452 = vcmask 58368
          %v453 = vsel %vm452, %v451, 0.0
          %454 = vadd.xlane.f32.xlu0 %v453
          %v455 = vpop.xlane.xlu0 %454
          %v456 = vld [vmem:[#allocation3] sm:$0x1]
          %v458 = vperm.slane %v456, 0
          %v460 = vadd.f32 %v455, %v458
          %vm461 = vcmask 1024
          %462 = vst.msk [vmem:[%s7] sm:$0x3] %vm461, %v460
        $region94: #{tpu_custom_call.1} parent=81 // pred_fallthru
          _
        // Predicated region
        $region95: #{tpu_custom_call.1} parent=81 // pred_check
          %p463 = pneg %p190
        $region96: #{tpu_custom_call.1} parent=81 // pred_check_branch
          %465 = sbr.rel (%p463) target = $region98
        $region97: #{tpu_custom_call.1} parent=81 // pred_region
          _
        $region98: #{tpu_custom_call.1} parent=81 // pred_fallthru
          _
        // Predicated region
        $region99: #{tpu_custom_call.1} parent=81 // pred_check
          %p466 = pneg %p190
        $region100: #{tpu_custom_call.1} parent=81 // pred_check_branch
          %468 = sbr.rel (%p466) target = $region102
        $region101: #{tpu_custom_call.1} parent=81 // pred_region
          _
        $region102: #{tpu_custom_call.1} parent=81 // pred_fallthru
          _
      $region82: #{tpu_custom_call.1} parent=5 // pred_fallthru
        _
      %p469 = scmp.le.s32.totalorder 2, %s15
      // Predicated region
      $region103: #{tpu_custom_call.1} parent=5 // pred_check
        %p470 = pneg %p469
      $region104: #{tpu_custom_call.1} parent=5 // pred_check_branch
        %472 = sbr.rel (%p470) target = $region106
      $region105: #{tpu_custom_call.1} parent=5 // pred_region
        %s473 = ssub.s32 %s15, 2
      $region106: #{tpu_custom_call.1} parent=5 // pred_fallthru
        _
    $region6: #{tpu_custom_call.1} parent=1 // loop_footer
      %s19 = sadd.s32 1, %s15
    $region7: #{tpu_custom_call.1} parent=1 // loop_footer_branch
      %14 = sbr.rel target = $region3
    $region8: #{tpu_custom_call.1} parent=1 // loop_exit
      _

</llo_original>
